<compile_context>
chip_gen: v5e
topology: v5e:2x2
jax: 0.10.0
libtpu: 0.0.40
codegen_flags: <defaults>
</compile_context>

<pallas_src>
import math

import jax
import jax.numpy as jnp
from jax.experimental import pallas as pl
from jax.experimental.pallas import tpu as pltpu


def _cdiv(a, b):
    return (a + b - 1) // b


def _round_up(n, m):
    return ((n + m - 1) // m) * m


def _map_radius_kernel(x_ref, w_ref, b_ref, o_ref):
    # x_ref/o_ref: (TB, TL); w_ref/b_ref: (1, TL) -> sublane broadcast.
    t = x_ref[...] * w_ref[...] + b_ref[...]
    # sigmoid(t) = 0.5*tanh(0.5*t) + 0.5 : a single pass through the EUP
    # (tanh) plus VALU scaling, instead of exp + divide.
    o_ref[...] = (0.5 * jnp.tanh(0.5 * t) + 0.5).astype(o_ref.dtype)


def map_radius_forward(x, weight, bias, *, block_rows=None, block_lanes=None):
    """x: (B, C, D); weight, bias: (C, D). Returns sigmoid(x*w + b)."""
    B, C, D = x.shape
    assert weight.shape == (C, D) and bias.shape == (C, D)
    CD = C * D

    # Flatten to a lane-dense 2-D layout (free reshapes: row-major contiguous).
    x2 = x.reshape(B, CD)
    w2 = weight.reshape(1, CD)
    b2 = bias.reshape(1, CD)

    itemsize = jnp.dtype(x.dtype).itemsize
    # Dtype-aware sublane multiple: 8 (f32), 16 (bf16/f16), 32 (int8/fp8).
    sub = max(8, 32 // max(itemsize, 1))

    # ~2 MiB x-block: x + out double-buffered (~4x block bytes) stays well
    # under the 16 MiB v5e scoped-VMEM default (and v6e/v7x defaults).
    target_bytes = 2 * 1024 * 1024

    # Lane tile: full CD when even a minimal (sub-row) block fits the budget,
    # otherwise a multiple of 128 so block bytes stay bounded for huge CD.
    if block_lanes is None:
        max_lanes = max(128, (target_bytes // (sub * itemsize)) // 128 * 128)
        tl = CD if CD <= max_lanes else max_lanes
    else:
        tl = min(CD, _round_up(block_lanes, 128))

    # Row tile: as many rows as fit the byte budget, sublane aligned.
    if block_rows is None:
        tb = (target_bytes // max(tl * itemsize, 1)) // sub * sub
    else:
        tb = _round_up(block_rows, sub)
    tb = max(sub, tb)
    tb = min(tb, _round_up(B, sub))
    # Give the "parallel" batch axis >= 2 steps when B allows (v7x megacore).
    if B > sub:
        tb = min(tb, _round_up(_cdiv(B, 2), sub))

    grid = (_cdiv(B, tb), _cdiv(CD, tl))

    cost = pl.CostEstimate(
        flops=4 * B * CD,
        transcendentals=B * CD,
        bytes_accessed=(2 * B * CD + 2 * CD) * itemsize,
    )

    out = pl.pallas_call(
        _map_radius_kernel,
        out_shape=jax.ShapeDtypeStruct((B, CD), x.dtype),
        grid_spec=pltpu.PrefetchScalarGridSpec(
            num_scalar_prefetch=0,
            grid=grid,
            in_specs=[
                pl.BlockSpec((tb, tl), lambda i, j: (i, j)),
                pl.BlockSpec((1, tl), lambda i, j: (0, j)),   # weight resident row
                pl.BlockSpec((1, tl), lambda i, j: (0, j)),   # bias resident row
            ],
            out_specs=pl.BlockSpec((tb, tl), lambda i, j: (i, j)),
        ),
        compiler_params=pltpu.CompilerParams(
            dimension_semantics=("parallel", "arbitrary"),
        ),
        cost_estimate=cost,
    )(x2, w2, b2)

    return out.reshape(B, C, D)


def init_params(key, conv_num, devide_inner, dtype=jnp.float32):
    """kaiming_uniform_-style init matching the PyTorch module.

    For a 2-D tensor (conv_num, devide_inner), PyTorch's kaiming_uniform_
    (a=0, leaky_relu) uses fan_in = devide_inner, gain = sqrt(2),
    bound = gain * sqrt(3 / fan_in).
    """
    fan_in = devide_inner
    gain = math.sqrt(2.0)
    bound = gain * math.sqrt(3.0 / fan_in)
    kw, kb = jax.random.split(key)
    weight = jax.random.uniform(
        kw, (conv_num, devide_inner), dtype=dtype, minval=-bound, maxval=bound
    )
    bias = jax.random.uniform(
        kb, (conv_num, devide_inner), dtype=dtype, minval=-bound, maxval=bound
    )
    return weight, bias


if __name__ == "__main__":
    key = jax.random.PRNGKey(0)
    k_x, k_p, k_x2, k_p2, k_x3, k_p3 = jax.random.split(key, 6)

    # --- Test 1: small canonical shape -----------------------------------
    B, conv_num, devide_inner = 2, 8, 128
    x = jax.random.normal(k_x, (B, conv_num, devide_inner), dtype=jnp.float32)
    weight, bias = init_params(k_p, conv_num, devide_inner)

    out = jax.block_until_ready(map_radius_forward(x, weight, bias))
    ref = jax.nn.sigmoid(x * weight[None] + bias[None])
    assert out.shape == (B, conv_num, devide_inner)
    assert jnp.allclose(out, ref, atol=1e-5, rtol=1e-5)

    # --- Test 2: ragged batch, CD not a multiple of 128 (masked writeback,
    #             no wrapper padding) -------------------------------------
    B2, C2, D2 = 260, 5, 100
    x2 = jax.random.normal(k_x2, (B2, C2, D2), dtype=jnp.float32)
    w2, b2 = init_params(k_p2, C2, D2)
    out2 = jax.block_until_ready(map_radius_forward(x2, w2, b2))
    ref2 = jax.nn.sigmoid(x2 * w2[None] + b2[None])
    assert out2.shape == (B2, C2, D2)
    assert jnp.allclose(out2, ref2, atol=1e-5, rtol=1e-5)

    # --- Test 3: exercise the CD (lane) tiling path with ragged blocks on
    #             both grid axes ------------------------------------------
    B3, C3, D3 = 10, 3, 100
    x3 = jax.random.normal(k_x3, (B3, C3, D3), dtype=jnp.float32)
    w3, b3 = init_params(k_p3, C3, D3)
    out3 = jax.block_until_ready(
        map_radius_forward(x3, w3, b3, block_lanes=128)
    )
    ref3 = jax.nn.sigmoid(x3 * w3[None] + b3[None])
    assert out3.shape == (B3, C3, D3)
    assert jnp.allclose(out3, ref3, atol=1e-5, rtol=1e-5)

    print("KERNEL_OK")
</pallas_src>

<mosaic_0001>
module attributes {stable_mosaic.version = 11 : i64} {
  func.func @_map_radius_kernel(%arg0: i32, %arg1: i32, %arg2: memref<8x1024xf32, #tpu.memory_space<vmem>>, %arg3: memref<1x1024xf32, #tpu.memory_space<vmem>>, %arg4: memref<1x1024xf32, #tpu.memory_space<vmem>>, %arg5: memref<8x1024xf32, #tpu.memory_space<vmem>>) attributes {dimension_semantics = [#tpu.dimension_semantics<parallel>, #tpu.dimension_semantics<arbitrary>], iteration_bounds = array<i64: 1, 1>, scalar_prefetch = 0 : i64, scratch_operands = 0 : i64, tpu.core_type = #tpu.core_type<tc>, window_params = [{transform_indices = @transform_0, window_bounds = array<i64: 8, 1024>}, {transform_indices = @transform_1, window_bounds = array<i64: 1, 1024>}, {transform_indices = @transform_2, window_bounds = array<i64: 1, 1024>}, {transform_indices = @transform_3, window_bounds = array<i64: 8, 1024>}]} {
    %c0 = arith.constant 0 : index
    %c0_0 = arith.constant 0 : index
    %0 = vector.load %arg2[%c0, %c0_0] : memref<8x1024xf32, #tpu.memory_space<vmem>>, vector<8x1024xf32>
    %c0_1 = arith.constant 0 : index
    %c0_2 = arith.constant 0 : index
    %1 = vector.load %arg3[%c0_1, %c0_2] : memref<1x1024xf32, #tpu.memory_space<vmem>>, vector<1x1024xf32>
    %2 = vector.broadcast %1 : vector<1x1024xf32> to vector<8x1024xf32>
    %3 = arith.mulf %0, %2 : vector<8x1024xf32>
    %c0_3 = arith.constant 0 : index
    %c0_4 = arith.constant 0 : index
    %4 = vector.load %arg4[%c0_3, %c0_4] : memref<1x1024xf32, #tpu.memory_space<vmem>>, vector<1x1024xf32>
    %5 = vector.broadcast %4 : vector<1x1024xf32> to vector<8x1024xf32>
    %6 = arith.addf %3, %5 : vector<8x1024xf32>
    %cst = arith.constant 5.000000e-01 : f32
    %7 = vector.broadcast %cst : f32 to vector<8x1024xf32>
    %8 = arith.mulf %7, %6 : vector<8x1024xf32>
    %9 = math.tanh %8 : vector<8x1024xf32>
    %cst_5 = arith.constant 5.000000e-01 : f32
    %10 = vector.broadcast %cst_5 : f32 to vector<8x1024xf32>
    %11 = arith.mulf %10, %9 : vector<8x1024xf32>
    %cst_6 = arith.constant 5.000000e-01 : f32
    %12 = vector.broadcast %cst_6 : f32 to vector<8x1024xf32>
    %13 = arith.addf %11, %12 : vector<8x1024xf32>
    %c0_7 = arith.constant 0 : index
    %c0_8 = arith.constant 0 : index
    %14 = vector.load %arg5[%c0_7, %c0_8] : memref<8x1024xf32, #tpu.memory_space<vmem>>, vector<8x1024xf32>
    tpu.vector_store %arg5[%c0_7, %c0_8], %13 {strides = array<i32>} : memref<8x1024xf32, #tpu.memory_space<vmem>>, vector<8x1024xf32>,
    return
  }
  func.func @transform_0(%arg0: i32, %arg1: i32) -> (i32, i32) {
    %c0_i32 = arith.constant 0 : i32
    return %arg0, %arg1 : i32, i32
  }
  func.func @transform_1(%arg0: i32, %arg1: i32) -> (i32, i32) {
    %c0_i32 = arith.constant 0 : i32
    %c0_i32_0 = arith.constant 0 : i32
    return %c0_i32, %arg1 : i32, i32
  }
  func.func @transform_2(%arg0: i32, %arg1: i32) -> (i32, i32) {
    %c0_i32 = arith.constant 0 : i32
    %c0_i32_0 = arith.constant 0 : i32
    return %c0_i32, %arg1 : i32, i32
  }
  func.func @transform_3(%arg0: i32, %arg1: i32) -> (i32, i32) {
    %c0_i32 = arith.constant 0 : i32
    return %arg0, %arg1 : i32, i32
  }
}

</mosaic_0001>

<llo_original>
// kernel: tpu_custom_call.1
$region0: #{tpu_custom_call.1}
  #allocation0 [shape = 'u32[]', space=smem, size = 0x4, offset = 0x4, fixed_abs, tag = 'smem constant byte address 0x4 - core index']
  #allocation1 [shape = 'u32[72,128]{1,0:T(1,128)}', space=vmem, size = 0x9000, scoped, tag = 'internal scratch']
  %s0 = inlined_call_operand.hbm [shape: f32[2,1024], index: 0, kind: input, shape index: {}]
  %s1 = inlined_call_operand.hbm [shape: f32[1,1024], index: 1, kind: input, shape index: {}]
  %s2 = inlined_call_operand.hbm [shape: f32[1,1024], index: 2, kind: input, shape index: {}]
  %s3 = inlined_call_operand.hbm [shape: f32[2,1024], index: 3, kind: output, shape index: {}]
  %s4 = sld [smem:[#allocation0]]
  $region34: #{tpu_custom_call.1} parent=0
    _
  %s6 = ssub.s32 1, %s4
  %s7 = scalar_select 0, %s6, %s4
  $region1: #{tpu_custom_call.1} parent=0
    #allocation2 [shape = 'u8[32768]{0}', space=vmem, size = 0x8000, scoped, tag = 'input window, operand 0, single buffered']
    #allocation3 [shape = 's32[1]{0}', space=sflag, size = 0x4, scoped, tag = 'scoped memory for tpu_custom_call.1']
    #allocation4 [shape = 's32[1]{0}', space=sflag, size = 0x4, scoped, tag = 'scoped memory for tpu_custom_call.1']
    #allocation5 [shape = 'u8[4096]{0}', space=vmem, size = 0x1000, scoped, tag = 'input window, operand 1, single buffered']
    #allocation6 [shape = 's32[1]{0}', space=sflag, size = 0x4, scoped, tag = 'scoped memory for tpu_custom_call.1']
    #allocation7 [shape = 'u8[4096]{0}', space=vmem, size = 0x1000, scoped, tag = 'input window, operand 2, single buffered']
    #allocation8 [shape = 'u8[32768]{0}', space=vmem, size = 0x8000, scoped, tag = 'output window, operand 0, single buffered']
    %8 = vsyncpa [#allocation3], 0
    %9 = vsyncpa [#allocation6], 0
    %10 = vsyncpa [#allocation4], 0
    // Predicated region
    $region2: #{tpu_custom_call.1} parent=1 // pred_check
      _
    $region3: #{tpu_custom_call.1} parent=1 // pred_check_branch
      %12 = sbr.rel (0) target = $region5
    $region4: #{tpu_custom_call.1} parent=1 // pred_region
      %14 = vsyncadd [#allocation3], 768
      %s15 = sshll.u32 %s0, 4
      %s16 = int_to_ptr.hbm [resolvable:$true] %s15
      %s17 = sshll.u32 [#allocation2], 4
      %s18 = int_to_ptr.vmem [resolvable:$true] %s17
      %23 = dma.hbm_to_vmem [thread:$0]  %s16, 256, %s18, [#allocation3], 256, 256, 16
    $region5: #{tpu_custom_call.1} parent=1 // pred_fallthru
      _
    // Predicated region
    $region6: #{tpu_custom_call.1} parent=1 // pred_check
      _
    $region7: #{tpu_custom_call.1} parent=1 // pred_check_branch
      %25 = sbr.rel (0) target = $region9
    $region8: #{tpu_custom_call.1} parent=1 // pred_region
      %27 = vsyncadd [#allocation6], 0
      %s29 = sshll.u32 %s1, 4
      %s30 = int_to_ptr.hbm [resolvable:$true] %s29
      %s31 = sshll.u32 [#allocation5], 4
      %s32 = int_to_ptr.vmem [resolvable:$true] %s31
      %34 = dma.hbm_to_vmem [thread:$0]  %s30, 128, %s32, [#allocation6]
    $region9: #{tpu_custom_call.1} parent=1 // pred_fallthru
      _
    // Predicated region
    $region10: #{tpu_custom_call.1} parent=1 // pred_check
      _
    $region11: #{tpu_custom_call.1} parent=1 // pred_check_branch
      %36 = sbr.rel (0) target = $region13
    $region12: #{tpu_custom_call.1} parent=1 // pred_region
      %38 = vsyncadd [#allocation6], 0
      %s40 = sshll.u32 %s2, 4
      %s41 = int_to_ptr.hbm [resolvable:$true] %s40
      %s42 = sshll.u32 [#allocation7], 4
      %s43 = int_to_ptr.vmem [resolvable:$true] %s42
      %45 = dma.hbm_to_vmem [thread:$0]  %s41, 128, %s43, [#allocation6]
    $region13: #{tpu_custom_call.1} parent=1 // pred_fallthru
      _
    // Predicated region
    $region14: #{tpu_custom_call.1} parent=1 // pred_check
      _
    $region15: #{tpu_custom_call.1} parent=1 // pred_check_branch
      %47 = sbr.rel (0) target = $region17
    $region16: #{tpu_custom_call.1} parent=1 // pred_region
      %49 = dma.done [#allocation3], 1024
    $region17: #{tpu_custom_call.1} parent=1 // pred_fallthru
      _
    // Predicated region
    $region18: #{tpu_custom_call.1} parent=1 // pred_check
      _
    $region19: #{tpu_custom_call.1} parent=1 // pred_check_branch
      %51 = sbr.rel (0) target = $region21
    $region20: #{tpu_custom_call.1} parent=1 // pred_region
      %53 = dma.done [#allocation6], 128
    $region21: #{tpu_custom_call.1} parent=1 // pred_fallthru
      _
    // Predicated region
    $region22: #{tpu_custom_call.1} parent=1 // pred_check
      _
    $region23: #{tpu_custom_call.1} parent=1 // pred_check_branch
      %55 = sbr.rel (0) target = $region25
    $region24: #{tpu_custom_call.1} parent=1 // pred_region
      %57 = dma.done [#allocation6], 128
    $region25: #{tpu_custom_call.1} parent=1 // pred_fallthru
      _
    %v58 = vld [vmem:[#allocation2] sm:$0xff]
    %v59 = vld [vmem:[#allocation2 + $0x8] sm:$0xff]
    %v60 = vld [vmem:[#allocation2 + $0x10] sm:$0xff]
    %v61 = vld [vmem:[#allocation2 + $0x18] sm:$0xff]
    %v62 = vld [vmem:[#allocation2 + $0x20] sm:$0xff]
    %v63 = vld [vmem:[#allocation2 + $0x28] sm:$0xff]
    %v64 = vld [vmem:[#allocation2 + $0x30] sm:$0xff]
    %v65 = vld [vmem:[#allocation2 + $0x38] sm:$0xff]
    %v66 = vld [vmem:[#allocation5] sm:$0xff]
    %v68 = vperm.slane %v66, 0
    %v69 = vperm.slane %v66, 1
    %v70 = vperm.slane %v66, 2
    %v71 = vperm.slane %v66, 3
    %v72 = vperm.slane %v66, 4
    %v73 = vperm.slane %v66, 5
    %v74 = vperm.slane %v66, 6
    %v75 = vperm.slane %v66, 7
    %v76 = vrot.slane %v69, 6
    %v77 = vrot.slane %v70, 4
    %v78 = vrot.slane %v71, 2
    %v79 = vrot.slane %v73, 6
    %v80 = vrot.slane %v74, 4
    %v81 = vrot.slane %v75, 2
    %vm82 = vcmask 1041408
    %v83 = vsel %vm82, %v68, %v76
    %vm84 = vcmask 1045508
    %v85 = vsel %vm84, %v77, %v78
    %vm86 = vcmask 1043456
    %v87 = vsel %vm86, %v83, %v85
    %v88 = vsel %vm82, %v72, %v79
    %v89 = vsel %vm84, %v80, %v81
    %v90 = vsel %vm86, %v88, %v89
    %vm91 = vcmask 1043458
    %v92 = vsel %vm91, %v68, %v76
    %vm93 = vcmask 1045504
    %v94 = vsel %vm93, %v78, %v77
    %vm95 = vcmask 1045506
    %v96 = vsel %vm95, %v92, %v94
    %v97 = vrot.slane %v96, 2
    %v98 = vsel %vm91, %v72, %v79
    %v99 = vsel %vm93, %v81, %v80
    %v100 = vsel %vm95, %v98, %v99
    %v101 = vrot.slane %v100, 2
    %v102 = vsel %vm84, %v68, %v76
    %v103 = vsel %vm82, %v77, %v78
    %v104 = vsel %vm86, %v103, %v102
    %v105 = vrot.slane %v104, 4
    %v106 = vsel %vm84, %v72, %v79
    %v107 = vsel %vm82, %v80, %v81
    %v108 = vsel %vm86, %v107, %v106
    %v109 = vrot.slane %v108, 4
    %v110 = vsel %vm93, %v76, %v68
    %v111 = vsel %vm91, %v77, %v78
    %v112 = vsel %vm95, %v111, %v110
    %v113 = vrot.slane %v112, 6
    %v114 = vsel %vm93, %v79, %v72
    %v115 = vsel %vm91, %v80, %v81
    %v116 = vsel %vm95, %v115, %v114
    %v117 = vrot.slane %v116, 6
    %v126 = vmul.f32 %v58, %v87
    %v127 = vmul.f32 %v59, %v90
    %v128 = vmul.f32 %v60, %v97
    %v129 = vmul.f32 %v61, %v101
    %v130 = vmul.f32 %v62, %v105
    %v131 = vmul.f32 %v63, %v109
    %v132 = vmul.f32 %v64, %v113
    %v133 = vmul.f32 %v65, %v117
    %v134 = vld [vmem:[#allocation7] sm:$0xff]
    %v136 = vperm.slane %v134, 0
    %v137 = vperm.slane %v134, 1
    %v138 = vperm.slane %v134, 2
    %v139 = vperm.slane %v134, 3
    %v140 = vperm.slane %v134, 4
    %v141 = vperm.slane %v134, 5
    %v142 = vperm.slane %v134, 6
    %v143 = vperm.slane %v134, 7
    %v144 = vrot.slane %v137, 6
    %v145 = vrot.slane %v138, 4
    %v146 = vrot.slane %v139, 2
    %v147 = vrot.slane %v141, 6
    %v148 = vrot.slane %v142, 4
    %v149 = vrot.slane %v143, 2
    %v150 = vsel %vm82, %v136, %v144
    %v151 = vsel %vm84, %v145, %v146
    %v152 = vsel %vm86, %v150, %v151
    %v153 = vsel %vm82, %v140, %v147
    %v154 = vsel %vm84, %v148, %v149
    %v155 = vsel %vm86, %v153, %v154
    %v156 = vsel %vm91, %v136, %v144
    %v157 = vsel %vm93, %v146, %v145
    %v158 = vsel %vm95, %v156, %v157
    %v159 = vrot.slane %v158, 2
    %v160 = vsel %vm91, %v140, %v147
    %v161 = vsel %vm93, %v149, %v148
    %v162 = vsel %vm95, %v160, %v161
    %v163 = vrot.slane %v162, 2
    %v164 = vsel %vm84, %v136, %v144
    %v165 = vsel %vm82, %v145, %v146
    %v166 = vsel %vm86, %v165, %v164
    %v167 = vrot.slane %v166, 4
    %v168 = vsel %vm84, %v140, %v147
    %v169 = vsel %vm82, %v148, %v149
    %v170 = vsel %vm86, %v169, %v168
    %v171 = vrot.slane %v170, 4
    %v172 = vsel %vm93, %v144, %v136
    %v173 = vsel %vm91, %v145, %v146
    %v174 = vsel %vm95, %v173, %v172
    %v175 = vrot.slane %v174, 6
    %v176 = vsel %vm93, %v147, %v140
    %v177 = vsel %vm91, %v148, %v149
    %v178 = vsel %vm95, %v177, %v176
    %v179 = vrot.slane %v178, 6
    %v188 = vadd.f32 %v126, %v152
    %v189 = vadd.f32 %v127, %v155
    %v190 = vadd.f32 %v128, %v159
    %v191 = vadd.f32 %v129, %v163
    %v192 = vadd.f32 %v130, %v167
    %v193 = vadd.f32 %v131, %v171
    %v194 = vadd.f32 %v132, %v175
    %v195 = vadd.f32 %v133, %v179
    %v196 = vmul.f32 %v188, 0.5
    %v197 = vmul.f32 %v189, 0.5
    %v198 = vmul.f32 %v190, 0.5
    %v199 = vmul.f32 %v191, 0.5
    %v200 = vmul.f32 %v192, 0.5
    %v201 = vmul.f32 %v193, 0.5
    %v202 = vmul.f32 %v194, 0.5
    %v203 = vmul.f32 %v195, 0.5
    %v204 = vtanh.pop %v196
    %v205 = vtanh.pop %v197
    %v206 = vtanh.pop %v198
    %v207 = vtanh.pop %v199
    %v208 = vtanh.pop %v200
    %v209 = vtanh.pop %v201
    %v210 = vtanh.pop %v202
    %v211 = vtanh.pop %v203
    %v212 = vmul.f32 %v204, 0.5
    %v213 = vmul.f32 %v205, 0.5
    %v214 = vmul.f32 %v206, 0.5
    %v215 = vmul.f32 %v207, 0.5
    %v216 = vmul.f32 %v208, 0.5
    %v217 = vmul.f32 %v209, 0.5
    %v218 = vmul.f32 %v210, 0.5
    %v219 = vmul.f32 %v211, 0.5
    %v220 = vadd.f32 %v212, 0.5
    %v221 = vadd.f32 %v213, 0.5
    %v222 = vadd.f32 %v214, 0.5
    %v223 = vadd.f32 %v215, 0.5
    %v224 = vadd.f32 %v216, 0.5
    %v225 = vadd.f32 %v217, 0.5
    %v226 = vadd.f32 %v218, 0.5
    %v227 = vadd.f32 %v219, 0.5
    %228 = vst [vmem:[#allocation8] sm:$0xff] %v220
    %229 = vst [vmem:[#allocation8 + $0x8] sm:$0xff] %v221
    %230 = vst [vmem:[#allocation8 + $0x10] sm:$0xff] %v222
    %231 = vst [vmem:[#allocation8 + $0x18] sm:$0xff] %v223
    %232 = vst [vmem:[#allocation8 + $0x20] sm:$0xff] %v224
    %233 = vst [vmem:[#allocation8 + $0x28] sm:$0xff] %v225
    %234 = vst [vmem:[#allocation8 + $0x30] sm:$0xff] %v226
    %235 = vst [vmem:[#allocation8 + $0x38] sm:$0xff] %v227
    // Predicated region
    $region26: #{tpu_custom_call.1} parent=1 // pred_check
      _
    $region27: #{tpu_custom_call.1} parent=1 // pred_check_branch
      %237 = sbr.rel (0) target = $region29
    $region28: #{tpu_custom_call.1} parent=1 // pred_region
      %239 = vsyncadd [#allocation4], 768
      %s240 = sshll.u32 [#allocation8], 4
      %s241 = int_to_ptr.vmem [resolvable:$true] %s240
      %s242 = sshll.u32 %s3, 4
      %s243 = int_to_ptr.hbm [resolvable:$true] %s242
      %248 = dma.vmem_to_hbm [thread:$0]  %s241, 256, %s243, [#allocation4], 256, 256, 16
    $region29: #{tpu_custom_call.1} parent=1 // pred_fallthru
      _
    // Predicated region
    $region30: #{tpu_custom_call.1} parent=1 // pred_check
      _
    $region31: #{tpu_custom_call.1} parent=1 // pred_check_branch
      %250 = sbr.rel (0) target = $region33
    $region32: #{tpu_custom_call.1} parent=1 // pred_region
      %252 = dma.done [#allocation4], 1024
    $region33: #{tpu_custom_call.1} parent=1 // pred_fallthru
      _
    %253 = vsyncpa [#allocation3], 1
    %254 = vsyncpa [#allocation6], 1
    %255 = vsyncpa [#allocation4], 1

</llo_original>
